<compile_context>
chip_gen: v6e
topology: v6e:2x2x1
jax: 0.10.0
libtpu: 0.0.40
codegen_flags: <defaults>
</compile_context>

<pallas_src>
import functools

import jax
import jax.numpy as jnp
from jax.experimental import pallas as pl
from jax.experimental.pallas import tpu as pltpu

LANE = 128
SUBLANE = 8


def _round_up(x, m):
    return ((x + m - 1) // m) * m


def _lstm_classifier_kernel(ids_ref, slab_ref, out_ref, *, S, Bp, Vp, E, H):
    """Single-invocation LSTM classifier.

    ids_ref  : (S*Bp, 1) int32   token ids (batch padded with padding_idx=0), VMEM
    slab_ref : (Vp+E+H+3, 128)   packed params: rows [0,Vp)=emb (lanes [0,E)),
               [Vp,Vp+E)=W_x, [Vp+E,Vp+E+H)=W_h, then b_fused, w_out (lanes [0,H)),
               b_out (lane-broadcast). Gate column order i|f|g|o.
    out_ref  : (Bp, 4H=128)      lane-dense output; probability broadcast across lanes
    """
    r_wx = Vp
    r_wh = Vp + E
    r_b = Vp + E + H

    # --- unpack the resident parameter slab (static slices, zero-cost views) ---
    emb = slab_ref[0:Vp, :][:, 0:E]                # (Vp, E)   vocab table
    w_x = slab_ref[r_wx:r_wh, :]                   # (E, 4H)   input  -> gates
    w_h = slab_ref[r_wh:r_b, :]                    # (H, 4H)   hidden -> gates
    b_g = slab_ref[r_b:r_b + 1, :]                 # (1, 4H)   fused gate bias
    w_o = slab_ref[r_b + 1:r_b + 2, :][:, 0:H]     # (1, H)    output linear weight
    b_o = slab_ref[r_b + 2:r_b + 3, :]             # (1, 4H)   output bias (all lanes equal)

    # --- embedding gather + input projection, hoisted out of the recurrence ---
    ids = ids_ref[...]                                                  # (S*Bp, 1) int32
    iota = jax.lax.broadcasted_iota(jnp.int32, (S * Bp, Vp), 1)
    onehot = (iota == ids).astype(jnp.float32)                          # (S*Bp, Vp)
    proj_table = jnp.dot(emb, w_x, preferred_element_type=jnp.float32)  # (Vp, 4H)
    xproj = jnp.dot(onehot, proj_table,
                    preferred_element_type=jnp.float32) + b_g           # (S*Bp, 4H), bias folded

    # --- recurrence: only h @ W_h stays on the serial critical path ---
    h = jnp.zeros((Bp, H), jnp.float32)
    c = jnp.zeros((Bp, H), jnp.float32)
    for t in range(S):  # S small & static -> full unroll, h/c stay in vregs
        gates = xproj[t * Bp:(t + 1) * Bp, :] + jnp.dot(
            h, w_h, preferred_element_type=jnp.float32)                 # (Bp, 4H)
        sig = jax.nn.sigmoid(gates)      # one full-128-lane EUP pass
        tnh = jnp.tanh(gates)            # one full-128-lane tanh pass
        i_g = sig[:, 0 * H:1 * H]
        f_g = sig[:, 1 * H:2 * H]
        o_g = sig[:, 3 * H:4 * H]
        g_g = tnh[:, 2 * H:3 * H]
        c = f_g * c + i_g * g_g
        h = o_g * jnp.tanh(c)

    # --- Linear(H, 1) + sigmoid: VPU multiply + XLU lane reduce (no N=1 MXU pass) ---
    logit = jnp.sum(h * w_o, axis=1, keepdims=True)                     # (Bp, 1)
    out_ref[...] = jax.nn.sigmoid(logit + b_o)                          # lane-dense (Bp, 128)


def prepare_kernel_params(params):
    """Pack all weights into one slab (done once, outside the per-call path)."""
    emb_table = params["embedding"]                 # (V, E), row 0 (padding_idx) is zero
    V, E = emb_table.shape
    H = params["wii"].shape[1]
    assert 4 * H == LANE, "lane-dense layout assumes 4*hidden_size == 128"
    assert E <= LANE and H <= LANE
    Vp = _round_up(V, SUBLANE)

    emb_rows = jnp.zeros((Vp, LANE), jnp.float32).at[:V, :E].set(emb_table)
    w_x = jnp.concatenate([params["wii"], params["wif"], params["wig"], params["wio"]], axis=1)
    w_h = jnp.concatenate([params["uii"], params["uif"], params["uig"], params["uio"]], axis=1)
    b_g = jnp.concatenate([params["bi"], params["bf"], params["bg"], params["bo"]], axis=1)
    w_o = jnp.zeros((1, LANE), jnp.float32).at[0, :H].set(params["wout"][:, 0])
    b_o = jnp.full((1, LANE), params["bout"][0, 0], jnp.float32)

    slab = jnp.concatenate([emb_rows, w_x, w_h, b_g, w_o, b_o], axis=0)  # (Vp+E+H+3, 128)
    return slab, {"Vp": Vp, "E": E, "H": H}


def rnn_classifier_forward(sequence, slab, dims):
    """sequence: (seq_len, batch) int32. Returns (batch,) float32 probabilities."""
    Vp, E, H = dims["Vp"], dims["E"], dims["H"]
    S, B = sequence.shape
    Bp = _round_up(B, SUBLANE)
    # Tiny int32 pad + reshape is all that remains on the wrapper side (pad uses padding_idx=0).
    ids = jnp.pad(sequence.astype(jnp.int32), ((0, 0), (0, Bp - B))).reshape(S * Bp, 1)

    kernel = functools.partial(_lstm_classifier_kernel, S=S, Bp=Bp, Vp=Vp, E=E, H=H)
    vmem = pl.BlockSpec(memory_space=pltpu.MemorySpace.VMEM)
    out = pl.pallas_call(
        kernel,
        out_shape=jax.ShapeDtypeStruct((Bp, 4 * H), jnp.float32),
        in_specs=[vmem, vmem],
        out_specs=vmem,
    )(ids, slab)
    return out[:B, 0]


def reference_forward(sequence, params):
    emb = params["embedding"][sequence]               # (S, B, E)
    S, B, _ = emb.shape
    H = params["wii"].shape[1]
    h = jnp.zeros((B, H), jnp.float32)
    c = jnp.zeros((B, H), jnp.float32)
    for t in range(S):
        x = emb[t]
        i = jax.nn.sigmoid(x @ params["wii"] + h @ params["uii"] + params["bi"])
        f = jax.nn.sigmoid(x @ params["wif"] + h @ params["uif"] + params["bf"])
        g = jnp.tanh(x @ params["wig"] + h @ params["uig"] + params["bg"])
        o = jax.nn.sigmoid(x @ params["wio"] + h @ params["uio"] + params["bo"])
        c = f * c + i * g
        h = o * jnp.tanh(c)
    logits = h @ params["wout"] + params["bout"]
    return jax.nn.sigmoid(logits).reshape(-1)


def init_params(key, num_embeddings, embedding_dim, hidden_size):
    ks = jax.random.split(key, 16)
    k = 1.0 / jnp.sqrt(hidden_size)

    def u(rng, shape):
        return jax.random.uniform(rng, shape, jnp.float32, -k, k)

    emb = jax.random.normal(ks[0], (num_embeddings, embedding_dim), jnp.float32)
    emb = emb.at[0].set(0.0)   # padding_idx = 0
    params = {"embedding": emb}
    names_shapes = [
        ("wii", (embedding_dim, hidden_size)), ("wif", (embedding_dim, hidden_size)),
        ("wig", (embedding_dim, hidden_size)), ("wio", (embedding_dim, hidden_size)),
        ("uii", (hidden_size, hidden_size)), ("uif", (hidden_size, hidden_size)),
        ("uig", (hidden_size, hidden_size)), ("uio", (hidden_size, hidden_size)),
        ("bi", (1, hidden_size)), ("bf", (1, hidden_size)),
        ("bg", (1, hidden_size)), ("bo", (1, hidden_size)),
        ("wout", (hidden_size, 1)), ("bout", (1, 1)),
    ]
    for (name, shape), rng in zip(names_shapes, ks[1:15]):
        params[name] = u(rng, shape)
    return params


if __name__ == "__main__":
    num_embeddings, embedding_dim, hidden_size = 50, 32, 32
    seq_len, batch = 8, 4

    key = jax.random.PRNGKey(0)
    k_param, k_seq = jax.random.split(key)
    params = init_params(k_param, num_embeddings, embedding_dim, hidden_size)
    sequence = jax.random.randint(k_seq, (seq_len, batch), 0, num_embeddings, jnp.int32)

    slab, dims = prepare_kernel_params(params)        # pre-fused once, not per forward call

    out = rnn_classifier_forward(sequence, slab, dims)
    out = jax.block_until_ready(out)

    ref = reference_forward(sequence, params)
    assert out.shape == (batch,)
    assert jnp.all((out > 0.0) & (out < 1.0))
    assert jnp.allclose(out, ref, atol=1e-3, rtol=1e-3), (out, ref)
    print("KERNEL_OK")
</pallas_src>

<mosaic_0001>
module attributes {stable_mosaic.version = 11 : i64} {
  func.func @_lstm_classifier_kernel(%arg0: memref<64x1xi32, #tpu.memory_space<vmem>>, %arg1: memref<123x128xf32, #tpu.memory_space<vmem>>, %arg2: memref<8x128xf32, #tpu.memory_space<vmem>>) attributes {dimension_semantics = [], scalar_prefetch = 0 : i64, scratch_operands = 0 : i64, tpu.core_type = #tpu.core_type<tc>} {
    %c0 = arith.constant 0 : index
    %c0_0 = arith.constant 0 : index
    %0 = vector.load %arg1[%c0, %c0_0] : memref<123x128xf32, #tpu.memory_space<vmem>>, vector<56x128xf32>
    %1 = vector.extract_strided_slice %0 {offsets = [0, 0], sizes = [56, 32], strides = [1, 1]} : vector<56x128xf32> to vector<56x32xf32>
    %c56 = arith.constant 56 : index
    %c0_1 = arith.constant 0 : index
    %2 = vector.load %arg1[%c56, %c0_1] : memref<123x128xf32, #tpu.memory_space<vmem>>, vector<32x128xf32>
    %c88 = arith.constant 88 : index
    %c0_2 = arith.constant 0 : index
    %3 = vector.load %arg1[%c88, %c0_2] : memref<123x128xf32, #tpu.memory_space<vmem>>, vector<32x128xf32>
    %c120 = arith.constant 120 : index
    %c0_3 = arith.constant 0 : index
    %4 = vector.load %arg1[%c120, %c0_3] : memref<123x128xf32, #tpu.memory_space<vmem>>, vector<1x128xf32>
    %c121 = arith.constant 121 : index
    %c0_4 = arith.constant 0 : index
    %5 = vector.load %arg1[%c121, %c0_4] : memref<123x128xf32, #tpu.memory_space<vmem>>, vector<1x128xf32>
    %6 = vector.extract_strided_slice %5 {offsets = [0, 0], sizes = [1, 32], strides = [1, 1]} : vector<1x128xf32> to vector<1x32xf32>
    %c122 = arith.constant 122 : index
    %c0_5 = arith.constant 0 : index
    %7 = vector.load %arg1[%c122, %c0_5] : memref<123x128xf32, #tpu.memory_space<vmem>>, vector<1x128xf32>
    %c0_6 = arith.constant 0 : index
    %c0_7 = arith.constant 0 : index
    %8 = vector.load %arg0[%c0_6, %c0_7] : memref<64x1xi32, #tpu.memory_space<vmem>>, vector<64x1xi32>
    %9 = tpu.iota {dimensions = array<i32: 1>} : vector<64x56xi32>
    %10 = vector.broadcast %8 : vector<64x1xi32> to vector<64x56xi32>
    %11 = arith.cmpi eq, %9, %10 : vector<64x56xi32>
    %12 = arith.extui %11 : vector<64x56xi1> to vector<64x56xi32>
    %13 = arith.sitofp %12 : vector<64x56xi32> to vector<64x56xf32>
    %cst = arith.constant dense<0.000000e+00> : vector<56x128xf32>
    %14 = tpu.matmul %1, %2, %cst {dimension_numbers = #tpu.dot_dimension_numbers<[1], [0], [0], [1], [0, 0, 1, 1], [], []>} : vector<56x32xf32>, vector<32x128xf32>, vector<56x128xf32> -> vector<56x128xf32>
    %cst_8 = arith.constant dense<0.000000e+00> : vector<64x128xf32>
    %15 = tpu.matmul %13, %14, %cst_8 {dimension_numbers = #tpu.dot_dimension_numbers<[1], [0], [0], [1], [0, 0, 1, 1], [], []>} : vector<64x56xf32>, vector<56x128xf32>, vector<64x128xf32> -> vector<64x128xf32>
    %16 = vector.broadcast %4 : vector<1x128xf32> to vector<64x128xf32>
    %17 = arith.addf %15, %16 : vector<64x128xf32>
    %cst_9 = arith.constant 0.000000e+00 : f32
    %18 = vector.broadcast %cst_9 : f32 to vector<8x32xf32>
    %cst_10 = arith.constant 0.000000e+00 : f32
    %19 = vector.broadcast %cst_10 : f32 to vector<8x32xf32>
    %20 = vector.extract_strided_slice %17 {offsets = [0, 0], sizes = [8, 128], strides = [1, 1]} : vector<64x128xf32> to vector<8x128xf32>
    %cst_11 = arith.constant dense<0.000000e+00> : vector<8x128xf32>
    %21 = tpu.matmul %18, %3, %cst_11 {dimension_numbers = #tpu.dot_dimension_numbers<[1], [0], [0], [1], [0, 0, 1, 1], [], []>} : vector<8x32xf32>, vector<32x128xf32>, vector<8x128xf32> -> vector<8x128xf32>
    %22 = arith.addf %20, %21 : vector<8x128xf32>
    %23 = arith.negf %22 : vector<8x128xf32>
    %24 = math.exp %23 : vector<8x128xf32>
    %cst_12 = arith.constant 1.000000e+00 : f32
    %25 = vector.broadcast %cst_12 : f32 to vector<8x128xf32>
    %26 = arith.addf %25, %24 : vector<8x128xf32>
    %27 = arith.divf %25, %26 : vector<8x128xf32>
    %28 = math.tanh %22 : vector<8x128xf32>
    %29 = vector.extract_strided_slice %27 {offsets = [0, 0], sizes = [8, 32], strides = [1, 1]} : vector<8x128xf32> to vector<8x32xf32>
    %30 = vector.extract_strided_slice %27 {offsets = [0, 32], sizes = [8, 32], strides = [1, 1]} : vector<8x128xf32> to vector<8x32xf32>
    %31 = vector.extract_strided_slice %27 {offsets = [0, 96], sizes = [8, 32], strides = [1, 1]} : vector<8x128xf32> to vector<8x32xf32>
    %32 = vector.extract_strided_slice %28 {offsets = [0, 64], sizes = [8, 32], strides = [1, 1]} : vector<8x128xf32> to vector<8x32xf32>
    %33 = arith.mulf %30, %19 : vector<8x32xf32>
    %34 = arith.mulf %29, %32 : vector<8x32xf32>
    %35 = arith.addf %33, %34 : vector<8x32xf32>
    %36 = math.tanh %35 : vector<8x32xf32>
    %37 = arith.mulf %31, %36 : vector<8x32xf32>
    %38 = vector.extract_strided_slice %17 {offsets = [8, 0], sizes = [8, 128], strides = [1, 1]} : vector<64x128xf32> to vector<8x128xf32>
    %cst_13 = arith.constant dense<0.000000e+00> : vector<8x128xf32>
    %39 = tpu.matmul %37, %3, %cst_13 {dimension_numbers = #tpu.dot_dimension_numbers<[1], [0], [0], [1], [0, 0, 1, 1], [], []>} : vector<8x32xf32>, vector<32x128xf32>, vector<8x128xf32> -> vector<8x128xf32>
    %40 = arith.addf %38, %39 : vector<8x128xf32>
    %41 = arith.negf %40 : vector<8x128xf32>
    %42 = math.exp %41 : vector<8x128xf32>
    %cst_14 = arith.constant 1.000000e+00 : f32
    %43 = vector.broadcast %cst_14 : f32 to vector<8x128xf32>
    %44 = arith.addf %43, %42 : vector<8x128xf32>
    %45 = arith.divf %43, %44 : vector<8x128xf32>
    %46 = math.tanh %40 : vector<8x128xf32>
    %47 = vector.extract_strided_slice %45 {offsets = [0, 0], sizes = [8, 32], strides = [1, 1]} : vector<8x128xf32> to vector<8x32xf32>
    %48 = vector.extract_strided_slice %45 {offsets = [0, 32], sizes = [8, 32], strides = [1, 1]} : vector<8x128xf32> to vector<8x32xf32>
    %49 = vector.extract_strided_slice %45 {offsets = [0, 96], sizes = [8, 32], strides = [1, 1]} : vector<8x128xf32> to vector<8x32xf32>
    %50 = vector.extract_strided_slice %46 {offsets = [0, 64], sizes = [8, 32], strides = [1, 1]} : vector<8x128xf32> to vector<8x32xf32>
    %51 = arith.mulf %48, %35 : vector<8x32xf32>
    %52 = arith.mulf %47, %50 : vector<8x32xf32>
    %53 = arith.addf %51, %52 : vector<8x32xf32>
    %54 = math.tanh %53 : vector<8x32xf32>
    %55 = arith.mulf %49, %54 : vector<8x32xf32>
    %56 = vector.extract_strided_slice %17 {offsets = [16, 0], sizes = [8, 128], strides = [1, 1]} : vector<64x128xf32> to vector<8x128xf32>
    %cst_15 = arith.constant dense<0.000000e+00> : vector<8x128xf32>
    %57 = tpu.matmul %55, %3, %cst_15 {dimension_numbers = #tpu.dot_dimension_numbers<[1], [0], [0], [1], [0, 0, 1, 1], [], []>} : vector<8x32xf32>, vector<32x128xf32>, vector<8x128xf32> -> vector<8x128xf32>
    %58 = arith.addf %56, %57 : vector<8x128xf32>
    %59 = arith.negf %58 : vector<8x128xf32>
    %60 = math.exp %59 : vector<8x128xf32>
    %cst_16 = arith.constant 1.000000e+00 : f32
    %61 = vector.broadcast %cst_16 : f32 to vector<8x128xf32>
    %62 = arith.addf %61, %60 : vector<8x128xf32>
    %63 = arith.divf %61, %62 : vector<8x128xf32>
    %64 = math.tanh %58 : vector<8x128xf32>
    %65 = vector.extract_strided_slice %63 {offsets = [0, 0], sizes = [8, 32], strides = [1, 1]} : vector<8x128xf32> to vector<8x32xf32>
    %66 = vector.extract_strided_slice %63 {offsets = [0, 32], sizes = [8, 32], strides = [1, 1]} : vector<8x128xf32> to vector<8x32xf32>
    %67 = vector.extract_strided_slice %63 {offsets = [0, 96], sizes = [8, 32], strides = [1, 1]} : vector<8x128xf32> to vector<8x32xf32>
    %68 = vector.extract_strided_slice %64 {offsets = [0, 64], sizes = [8, 32], strides = [1, 1]} : vector<8x128xf32> to vector<8x32xf32>
    %69 = arith.mulf %66, %53 : vector<8x32xf32>
    %70 = arith.mulf %65, %68 : vector<8x32xf32>
    %71 = arith.addf %69, %70 : vector<8x32xf32>
    %72 = math.tanh %71 : vector<8x32xf32>
    %73 = arith.mulf %67, %72 : vector<8x32xf32>
    %74 = vector.extract_strided_slice %17 {offsets = [24, 0], sizes = [8, 128], strides = [1, 1]} : vector<64x128xf32> to vector<8x128xf32>
    %cst_17 = arith.constant dense<0.000000e+00> : vector<8x128xf32>
    %75 = tpu.matmul %73, %3, %cst_17 {dimension_numbers = #tpu.dot_dimension_numbers<[1], [0], [0], [1], [0, 0, 1, 1], [], []>} : vector<8x32xf32>, vector<32x128xf32>, vector<8x128xf32> -> vector<8x128xf32>
    %76 = arith.addf %74, %75 : vector<8x128xf32>
    %77 = arith.negf %76 : vector<8x128xf32>
    %78 = math.exp %77 : vector<8x128xf32>
    %cst_18 = arith.constant 1.000000e+00 : f32
    %79 = vector.broadcast %cst_18 : f32 to vector<8x128xf32>
    %80 = arith.addf %79, %78 : vector<8x128xf32>
    %81 = arith.divf %79, %80 : vector<8x128xf32>
    %82 = math.tanh %76 : vector<8x128xf32>
    %83 = vector.extract_strided_slice %81 {offsets = [0, 0], sizes = [8, 32], strides = [1, 1]} : vector<8x128xf32> to vector<8x32xf32>
    %84 = vector.extract_strided_slice %81 {offsets = [0, 32], sizes = [8, 32], strides = [1, 1]} : vector<8x128xf32> to vector<8x32xf32>
    %85 = vector.extract_strided_slice %81 {offsets = [0, 96], sizes = [8, 32], strides = [1, 1]} : vector<8x128xf32> to vector<8x32xf32>
    %86 = vector.extract_strided_slice %82 {offsets = [0, 64], sizes = [8, 32], strides = [1, 1]} : vector<8x128xf32> to vector<8x32xf32>
    %87 = arith.mulf %84, %71 : vector<8x32xf32>
    %88 = arith.mulf %83, %86 : vector<8x32xf32>
    %89 = arith.addf %87, %88 : vector<8x32xf32>
    %90 = math.tanh %89 : vector<8x32xf32>
    %91 = arith.mulf %85, %90 : vector<8x32xf32>
    %92 = vector.extract_strided_slice %17 {offsets = [32, 0], sizes = [8, 128], strides = [1, 1]} : vector<64x128xf32> to vector<8x128xf32>
    %cst_19 = arith.constant dense<0.000000e+00> : vector<8x128xf32>
    %93 = tpu.matmul %91, %3, %cst_19 {dimension_numbers = #tpu.dot_dimension_numbers<[1], [0], [0], [1], [0, 0, 1, 1], [], []>} : vector<8x32xf32>, vector<32x128xf32>, vector<8x128xf32> -> vector<8x128xf32>
    %94 = arith.addf %92, %93 : vector<8x128xf32>
    %95 = arith.negf %94 : vector<8x128xf32>
    %96 = math.exp %95 : vector<8x128xf32>
    %cst_20 = arith.constant 1.000000e+00 : f32
    %97 = vector.broadcast %cst_20 : f32 to vector<8x128xf32>
    %98 = arith.addf %97, %96 : vector<8x128xf32>
    %99 = arith.divf %97, %98 : vector<8x128xf32>
    %100 = math.tanh %94 : vector<8x128xf32>
    %101 = vector.extract_strided_slice %99 {offsets = [0, 0], sizes = [8, 32], strides = [1, 1]} : vector<8x128xf32> to vector<8x32xf32>
    %102 = vector.extract_strided_slice %99 {offsets = [0, 32], sizes = [8, 32], strides = [1, 1]} : vector<8x128xf32> to vector<8x32xf32>
    %103 = vector.extract_strided_slice %99 {offsets = [0, 96], sizes = [8, 32], strides = [1, 1]} : vector<8x128xf32> to vector<8x32xf32>
    %104 = vector.extract_strided_slice %100 {offsets = [0, 64], sizes = [8, 32], strides = [1, 1]} : vector<8x128xf32> to vector<8x32xf32>
    %105 = arith.mulf %102, %89 : vector<8x32xf32>
    %106 = arith.mulf %101, %104 : vector<8x32xf32>
    %107 = arith.addf %105, %106 : vector<8x32xf32>
    %108 = math.tanh %107 : vector<8x32xf32>
    %109 = arith.mulf %103, %108 : vector<8x32xf32>
    %110 = vector.extract_strided_slice %17 {offsets = [40, 0], sizes = [8, 128], strides = [1, 1]} : vector<64x128xf32> to vector<8x128xf32>
    %cst_21 = arith.constant dense<0.000000e+00> : vector<8x128xf32>
    %111 = tpu.matmul %109, %3, %cst_21 {dimension_numbers = #tpu.dot_dimension_numbers<[1], [0], [0], [1], [0, 0, 1, 1], [], []>} : vector<8x32xf32>, vector<32x128xf32>, vector<8x128xf32> -> vector<8x128xf32>
    %112 = arith.addf %110, %111 : vector<8x128xf32>
    %113 = arith.negf %112 : vector<8x128xf32>
    %114 = math.exp %113 : vector<8x128xf32>
    %cst_22 = arith.constant 1.000000e+00 : f32
    %115 = vector.broadcast %cst_22 : f32 to vector<8x128xf32>
    %116 = arith.addf %115, %114 : vector<8x128xf32>
    %117 = arith.divf %115, %116 : vector<8x128xf32>
    %118 = math.tanh %112 : vector<8x128xf32>
    %119 = vector.extract_strided_slice %117 {offsets = [0, 0], sizes = [8, 32], strides = [1, 1]} : vector<8x128xf32> to vector<8x32xf32>
    %120 = vector.extract_strided_slice %117 {offsets = [0, 32], sizes = [8, 32], strides = [1, 1]} : vector<8x128xf32> to vector<8x32xf32>
    %121 = vector.extract_strided_slice %117 {offsets = [0, 96], sizes = [8, 32], strides = [1, 1]} : vector<8x128xf32> to vector<8x32xf32>
    %122 = vector.extract_strided_slice %118 {offsets = [0, 64], sizes = [8, 32], strides = [1, 1]} : vector<8x128xf32> to vector<8x32xf32>
    %123 = arith.mulf %120, %107 : vector<8x32xf32>
    %124 = arith.mulf %119, %122 : vector<8x32xf32>
    %125 = arith.addf %123, %124 : vector<8x32xf32>
    %126 = math.tanh %125 : vector<8x32xf32>
    %127 = arith.mulf %121, %126 : vector<8x32xf32>
    %128 = vector.extract_strided_slice %17 {offsets = [48, 0], sizes = [8, 128], strides = [1, 1]} : vector<64x128xf32> to vector<8x128xf32>
    %cst_23 = arith.constant dense<0.000000e+00> : vector<8x128xf32>
    %129 = tpu.matmul %127, %3, %cst_23 {dimension_numbers = #tpu.dot_dimension_numbers<[1], [0], [0], [1], [0, 0, 1, 1], [], []>} : vector<8x32xf32>, vector<32x128xf32>, vector<8x128xf32> -> vector<8x128xf32>
    %130 = arith.addf %128, %129 : vector<8x128xf32>
    %131 = arith.negf %130 : vector<8x128xf32>
    %132 = math.exp %131 : vector<8x128xf32>
    %cst_24 = arith.constant 1.000000e+00 : f32
    %133 = vector.broadcast %cst_24 : f32 to vector<8x128xf32>
    %134 = arith.addf %133, %132 : vector<8x128xf32>
    %135 = arith.divf %133, %134 : vector<8x128xf32>
    %136 = math.tanh %130 : vector<8x128xf32>
    %137 = vector.extract_strided_slice %135 {offsets = [0, 0], sizes = [8, 32], strides = [1, 1]} : vector<8x128xf32> to vector<8x32xf32>
    %138 = vector.extract_strided_slice %135 {offsets = [0, 32], sizes = [8, 32], strides = [1, 1]} : vector<8x128xf32> to vector<8x32xf32>
    %139 = vector.extract_strided_slice %135 {offsets = [0, 96], sizes = [8, 32], strides = [1, 1]} : vector<8x128xf32> to vector<8x32xf32>
    %140 = vector.extract_strided_slice %136 {offsets = [0, 64], sizes = [8, 32], strides = [1, 1]} : vector<8x128xf32> to vector<8x32xf32>
    %141 = arith.mulf %138, %125 : vector<8x32xf32>
    %142 = arith.mulf %137, %140 : vector<8x32xf32>
    %143 = arith.addf %141, %142 : vector<8x32xf32>
    %144 = math.tanh %143 : vector<8x32xf32>
    %145 = arith.mulf %139, %144 : vector<8x32xf32>
    %146 = vector.extract_strided_slice %17 {offsets = [56, 0], sizes = [8, 128], strides = [1, 1]} : vector<64x128xf32> to vector<8x128xf32>
    %cst_25 = arith.constant dense<0.000000e+00> : vector<8x128xf32>
    %147 = tpu.matmul %145, %3, %cst_25 {dimension_numbers = #tpu.dot_dimension_numbers<[1], [0], [0], [1], [0, 0, 1, 1], [], []>} : vector<8x32xf32>, vector<32x128xf32>, vector<8x128xf32> -> vector<8x128xf32>
    %148 = arith.addf %146, %147 : vector<8x128xf32>
    %149 = arith.negf %148 : vector<8x128xf32>
    %150 = math.exp %149 : vector<8x128xf32>
    %cst_26 = arith.constant 1.000000e+00 : f32
    %151 = vector.broadcast %cst_26 : f32 to vector<8x128xf32>
    %152 = arith.addf %151, %150 : vector<8x128xf32>
    %153 = arith.divf %151, %152 : vector<8x128xf32>
    %154 = math.tanh %148 : vector<8x128xf32>
    %155 = vector.extract_strided_slice %153 {offsets = [0, 0], sizes = [8, 32], strides = [1, 1]} : vector<8x128xf32> to vector<8x32xf32>
    %156 = vector.extract_strided_slice %153 {offsets = [0, 32], sizes = [8, 32], strides = [1, 1]} : vector<8x128xf32> to vector<8x32xf32>
    %157 = vector.extract_strided_slice %153 {offsets = [0, 96], sizes = [8, 32], strides = [1, 1]} : vector<8x128xf32> to vector<8x32xf32>
    %158 = vector.extract_strided_slice %154 {offsets = [0, 64], sizes = [8, 32], strides = [1, 1]} : vector<8x128xf32> to vector<8x32xf32>
    %159 = arith.mulf %156, %143 : vector<8x32xf32>
    %160 = arith.mulf %155, %158 : vector<8x32xf32>
    %161 = arith.addf %159, %160 : vector<8x32xf32>
    %162 = math.tanh %161 : vector<8x32xf32>
    %163 = arith.mulf %157, %162 : vector<8x32xf32>
    %164 = vector.broadcast %6 : vector<1x32xf32> to vector<8x32xf32>
    %165 = arith.mulf %163, %164 : vector<8x32xf32>
    %cst_27 = arith.constant dense<0.000000e+00> : vector<8xf32>
    %166 = vector.multi_reduction <add>, %165, %cst_27 [1] : vector<8x32xf32> to vector<8xf32>
    %167 = vector.shape_cast %166 : vector<8xf32> to vector<8x1xf32>
    %168 = vector.broadcast %167 : vector<8x1xf32> to vector<8x128xf32>
    %169 = vector.broadcast %7 : vector<1x128xf32> to vector<8x128xf32>
    %170 = arith.addf %168, %169 : vector<8x128xf32>
    %171 = arith.negf %170 : vector<8x128xf32>
    %172 = math.exp %171 : vector<8x128xf32>
    %cst_28 = arith.constant 1.000000e+00 : f32
    %173 = vector.broadcast %cst_28 : f32 to vector<8x128xf32>
    %174 = arith.addf %173, %172 : vector<8x128xf32>
    %175 = arith.divf %173, %174 : vector<8x128xf32>
    %c0_29 = arith.constant 0 : index
    %c0_30 = arith.constant 0 : index
    %176 = vector.load %arg2[%c0_29, %c0_30] : memref<8x128xf32, #tpu.memory_space<vmem>>, vector<8x128xf32>
    tpu.vector_store %arg2[%c0_29, %c0_30], %175 {strides = array<i32>} : memref<8x128xf32, #tpu.memory_space<vmem>>, vector<8x128xf32>,
    return
  }
}

</mosaic_0001>

<llo_original>
// kernel: tpu_custom_call.1
$region0: #{tpu_custom_call.1}
  #allocation0 [shape = 'u32[]', space=smem, size = 0x4, offset = 0x4, fixed_abs, tag = 'smem constant byte address 0x4 - core index']
  #allocation1 [shape = 'u32[144,128]{1,0:T(1,128)}', space=vmem, size = 0x12000, scoped, tag = 'internal scratch']
  %s0 = inlined_call_operand.vmem [shape: s32[64,1], index: 0, kind: input, shape index: {}]
  %s1 = inlined_call_operand.hbm [shape: f32[123,128], index: 1, kind: input, shape index: {}]
  %s2 = inlined_call_operand.hbm [shape: f32[8,128], index: 2, kind: output, shape index: {}]
  %s3 = sld [smem:[#allocation0]]
  $region22: #{tpu_custom_call.1} parent=0
    _
  %s5 = ssub.s32 1, %s3
  %s6 = scalar_select 0, %s5, %s3
  $region1: #{tpu_custom_call.1} parent=0
    #allocation2 [shape = 'u8[65536]{0}', space=vmem, size = 0x10000, scoped, tag = 'input window, operand 1, single buffered']
    #allocation3 [shape = 's32[1]{0}', space=sflag, size = 0x4, scoped, tag = 'scoped memory for tpu_custom_call.1']
    #allocation4 [shape = 's32[1]{0}', space=sflag, size = 0x4, scoped, tag = 'scoped memory for tpu_custom_call.1']
    #allocation5 [shape = 'u8[4096]{0}', space=vmem, size = 0x1000, scoped, tag = 'output window, operand 0, single buffered']
    %7 = vsyncpa [#allocation3], 0
    %8 = vsyncpa [#allocation4], 0
    // Predicated region
    $region2: #{tpu_custom_call.1} parent=1 // pred_check
      _
    $region3: #{tpu_custom_call.1} parent=1 // pred_check_branch
      %10 = sbr.rel (0) target = $region5
    $region4: #{tpu_custom_call.1} parent=1 // pred_region
      _
    $region5: #{tpu_custom_call.1} parent=1 // pred_fallthru
      _
    // Predicated region
    $region6: #{tpu_custom_call.1} parent=1 // pred_check
      _
    $region7: #{tpu_custom_call.1} parent=1 // pred_check_branch
      %12 = sbr.rel (0) target = $region9
    $region8: #{tpu_custom_call.1} parent=1 // pred_region
      %s14 = ssub.s32 2048, 2048
      %15 = vsyncadd [#allocation3], %s14
      %s16 = sshll.u32 [#allocation2], 4
      %s17 = int_to_ptr.vmem [resolvable:$true] %s16
      %22 = dma.hbm_to_vmem [thread:$0]  %s1, 2048, %s17, [#allocation3], 128, 128, 8
    $region9: #{tpu_custom_call.1} parent=1 // pred_fallthru
      _
    // Predicated region
    $region10: #{tpu_custom_call.1} parent=1 // pred_check
      _
    $region11: #{tpu_custom_call.1} parent=1 // pred_check_branch
      %24 = sbr.rel (0) target = $region13
    $region12: #{tpu_custom_call.1} parent=1 // pred_region
      %25 = dma.done [#allocation3], 2048
    $region13: #{tpu_custom_call.1} parent=1 // pred_fallthru
      _
    %v26 = vld [vmem:[#allocation2] sm:$0xff]
    %v27 = vld [vmem:[#allocation2 + $0x8] sm:$0xff]
    %v28 = vld [vmem:[#allocation2 + $0x10] sm:$0xff]
    %v29 = vld [vmem:[#allocation2 + $0x18] sm:$0xff]
    %v30 = vld [vmem:[#allocation2 + $0x20] sm:$0xff]
    %v31 = vld [vmem:[#allocation2 + $0x28] sm:$0xff]
    %v32 = vld [vmem:[#allocation2 + $0x30] sm:$0xff]
    %v33 = vld [vmem:[#allocation2 + $0x38] sm:$0xff]
    %v34 = vld [vmem:[#allocation2 + $0x40] sm:$0xff]
    %v35 = vld [vmem:[#allocation2 + $0x48] sm:$0xff]
    %v36 = vld [vmem:[#allocation2 + $0x50] sm:$0xff]
    %v37 = vld [vmem:[#allocation2 + $0x58] sm:$0xff]
    %v38 = vld [vmem:[#allocation2 + $0x60] sm:$0xff]
    %v39 = vld [vmem:[#allocation2 + $0x68] sm:$0xff]
    %v40 = vld [vmem:[#allocation2 + $0x70] sm:$0xff]
    %v41 = vld [vmem:[#allocation2 + $0x78] sm:$0x1]
    %v42 = vld [vmem:[#allocation2 + $0x79] sm:$0x1]
    %v43 = vld [vmem:[#allocation2 + $0x7a] sm:$0x1]
    %v44 = vld [vmem:[%s0] sm:$0xff]
    %v45 = vld [vmem:[%s0 + $0x8] sm:$0xff]
    %v46 = vld [vmem:[%s0 + $0x10] sm:$0xff]
    %v47 = vld [vmem:[%s0 + $0x18] sm:$0xff]
    %v48 = vld [vmem:[%s0 + $0x20] sm:$0xff]
    %v49 = vld [vmem:[%s0 + $0x28] sm:$0xff]
    %v50 = vld [vmem:[%s0 + $0x30] sm:$0xff]
    %v51 = vld [vmem:[%s0 + $0x38] sm:$0xff]
    %v52 = vlaneseq
    %v53 = vand.u32 %v52, 127
    %54 = vset.pattern.permute.xlu0 0
    %55 = vperm.xlu0 %54, %v44
    %v56 = vpop.permute.xlu0 %55
    %57 = vset.pattern.permute.xlu0 0
    %58 = vperm.xlu0 %57, %v45
    %v59 = vpop.permute.xlu0 %58
    %60 = vset.pattern.permute.xlu0 0
    %61 = vperm.xlu0 %60, %v46
    %v62 = vpop.permute.xlu0 %61
    %63 = vset.pattern.permute.xlu0 0
    %64 = vperm.xlu0 %63, %v47
    %v65 = vpop.permute.xlu0 %64
    %66 = vset.pattern.permute.xlu0 0
    %67 = vperm.xlu0 %66, %v48
    %v68 = vpop.permute.xlu0 %67
    %69 = vset.pattern.permute.xlu0 0
    %70 = vperm.xlu0 %69, %v49
    %v71 = vpop.permute.xlu0 %70
    %72 = vset.pattern.permute.xlu0 0
    %73 = vperm.xlu0 %72, %v50
    %v74 = vpop.permute.xlu0 %73
    %75 = vset.pattern.permute.xlu0 0
    %76 = vperm.xlu0 %75, %v51
    %v77 = vpop.permute.xlu0 %76
    %vm78 = vcmp.eq.s32.totalorder %v53, %v56
    %vm79 = vcmp.eq.s32.totalorder %v53, %v59
    %vm80 = vcmp.eq.s32.totalorder %v53, %v62
    %vm81 = vcmp.eq.s32.totalorder %v53, %v65
    %vm82 = vcmp.eq.s32.totalorder %v53, %v68
    %vm83 = vcmp.eq.s32.totalorder %v53, %v71
    %vm84 = vcmp.eq.s32.totalorder %v53, %v74
    %vm85 = vcmp.eq.s32.totalorder %v53, %v77
    %v86 = vsel %vm78, 1, 0
    %v87 = vsel %vm79, 1, 0
    %v88 = vsel %vm80, 1, 0
    %v89 = vsel %vm81, 1, 0
    %v90 = vsel %vm82, 1, 0
    %v91 = vsel %vm83, 1, 0
    %v92 = vsel %vm84, 1, 0
    %v93 = vsel %vm85, 1, 0
    %v94 = vcvt.s32.f32 %v86
    %v95 = vcvt.s32.f32 %v87
    %v96 = vcvt.s32.f32 %v88
    %v97 = vcvt.s32.f32 %v89
    %v98 = vcvt.s32.f32 %v90
    %v99 = vcvt.s32.f32 %v91
    %v100 = vcvt.s32.f32 %v92
    %v101 = vcvt.s32.f32 %v93
    %vm102 = vcmask 261120
    %v104 = vsel %vm102, %v26, 0
    %v107 = vsel %vm102, %v27, 0
    %v110 = vsel %vm102, %v28, 0
    %v113 = vsel %vm102, %v29, 0
    %v116 = vsel %vm102, %v30, 0
    %v119 = vsel %vm102, %v31, 0
    %v122 = vsel %vm102, %v32, 0
    %124 = vmatprep.subr.mxu0 0.0
    %125 = vmatpush1.msra.mxu0 0.0
    %126 = vmatprep.subr.mxu0 0.0
    %127 = vmatpush1.msra.mxu0 0.0
    %128 = vmatprep.subr.mxu0 0.0
    %129 = vmatpush1.msra.mxu0 0.0
    %130 = vmatprep.subr.mxu0 0.0
    %131 = vmatpush1.msra.mxu0 0.0
    %132 = vmatprep.subr.mxu0 0.0
    %133 = vmatpush1.msra.mxu0 0.0
    %134 = vmatprep.subr.mxu0 0.0
    %135 = vmatpush1.msra.mxu0 0.0
    %136 = vmatprep.subr.mxu0 0.0
    %137 = vmatpush1.msra.mxu0 0.0
    %138 = vmatprep.subr.mxu0 0.0
    %139 = vmatpush1.msra.mxu0 0.0
    %140 = vmatprep.subr.mxu0 0.0
    %141 = vmatpush1.msra.mxu0 0.0
    %142 = vmatprep.subr.mxu0 0.0
    %143 = vmatpush1.msra.mxu0 0.0
    %144 = vmatprep.subr.mxu0 0.0
    %145 = vmatpush1.msra.mxu0 0.0
    %146 = vmatprep.subr.mxu0 0.0
    %147 = vmatpush1.msra.mxu0 0.0
    %148 = vmatprep.subr.mxu0 0.0
    %149 = vmatpush1.msra.mxu0 %v36
    %150 = vmatprep.subr.mxu0 0.0
    %151 = vmatpush1.msra.mxu0 %v35
    %152 = vmatprep.subr.mxu0 0.0
    %153 = vmatpush1.msra.mxu0 %v34
    %154 = vmatprep.subr.mxu0 0.0
    %155 = vmatpush1.msra.mxu0 %v33
    %156 = vmatprep.subr.mxu0 0.0
    %157 = vmatpush2.msra.mxu0 0.0
    %158 = vmatprep.subr.mxu0 0.0
    %159 = vmatpush2.msra.mxu0 0.0
    %160 = vmatprep.subr.mxu0 0.0
    %161 = vmatpush2.msra.mxu0 0.0
    %162 = vmatprep.subr.mxu0 0.0
    %163 = vmatpush2.msra.mxu0 0.0
    %164 = vmatprep.subr.mxu0 0.0
    %165 = vmatpush2.msra.mxu0 0.0
    %166 = vmatprep.subr.mxu0 0.0
    %167 = vmatpush2.msra.mxu0 0.0
    %168 = vmatprep.subr.mxu0 0.0
    %169 = vmatpush2.msra.mxu0 0.0
    %170 = vmatprep.subr.mxu0 0.0
    %171 = vmatpush2.msra.mxu0 0.0
    %172 = vmatprep.subr.mxu0 0.0
    %173 = vmatpush2.msra.mxu0 0.0
    %174 = vmatprep.subr.mxu0 0.0
    %175 = vmatpush2.msra.mxu0 0.0
    %176 = vmatprep.subr.mxu0 0.0
    %177 = vmatpush2.msra.mxu0 0.0
    %178 = vmatprep.subr.mxu0 0.0
    %179 = vmatpush2.msra.mxu0 0.0
    %180 = vmatprep.subr.mxu0 0.0
    %181 = vmatpush2.msra.mxu0 0.0
    %182 = vmatprep.subr.mxu0 0.0
    %183 = vmatpush2.msra.mxu0 0.0
    %184 = vmatprep.subr.mxu0 0.0
    %185 = vmatpush2.msra.mxu0 0.0
    %186 = vmatprep.subr.mxu0 0.0
    %187 = vmatpush2.msra.mxu0 0.0
    %188 = vmatprep.mubr.f32.mxu0 0.0
    %189 = vmatmul.mubr.f32.gmra.mxu0 %v104
    %v190 = vpop.f32.mrf.mxu0
    %v191 = vadd.f32 0.0, %v190
    %v192 = vpop.f32.mrf.mxu0
    %193 = vmatprep.mubr.f32.mxu0 0.0
    %194 = vmatmul.mubr.f32.gmra.mxu0 %v107
    %v195 = vpop.f32.mrf.mxu0
    %v196 = vadd.f32 0.0, %v195
    %v197 = vpop.f32.mrf.mxu0
    %198 = vmatprep.mubr.f32.mxu0 0.0
    %199 = vmatmul.mubr.f32.gmra.mxu0 %v110
    %v200 = vpop.f32.mrf.mxu0
    %v201 = vadd.f32 0.0, %v200
    %v202 = vpop.f32.mrf.mxu0
    %203 = vmatprep.mubr.f32.mxu0 0.0
    %204 = vmatmul.mubr.f32.gmra.mxu0 %v113
    %v205 = vpop.f32.mrf.mxu0
    %v206 = vadd.f32 0.0, %v205
    %v207 = vpop.f32.mrf.mxu0
    %208 = vmatprep.mubr.f32.mxu0 0.0
    %209 = vmatmul.mubr.f32.gmra.mxu0 %v116
    %v210 = vpop.f32.mrf.mxu0
    %v211 = vadd.f32 0.0, %v210
    %v212 = vpop.f32.mrf.mxu0
    %213 = vmatprep.mubr.f32.mxu0 0.0
    %214 = vmatmul.mubr.f32.gmra.mxu0 %v119
    %v215 = vpop.f32.mrf.mxu0
    %v216 = vadd.f32 0.0, %v215
    %v217 = vpop.f32.mrf.mxu0
    %218 = vmatprep.mubr.f32.mxu0 0.0
    %219 = vmatmul.mubr.f32.gmra.mxu0 %v122
    %v220 = vpop.f32.mrf.mxu0
    %v221 = vadd.f32 0.0, %v220
    %v222 = vpop.f32.mrf.mxu0
    %223 = vdwg.mxu0
    %v224 = vlaneseq
    %v225 = vshrl.u32 %v224, 7
    %v226 = vsub.s32 0, %v225
    %v227 = vrot.slane %v41, %v226
    %vm228 = vcmask 457728
    %v230 = vsel %vm228, %v94, 0
    %v233 = vsel %vm228, %v95, 0
    %v236 = vsel %vm228, %v96, 0
    %v239 = vsel %vm228, %v97, 0
    %v242 = vsel %vm228, %v98, 0
    %v245 = vsel %vm228, %v99, 0
    %v248 = vsel %vm228, %v100, 0
    %v251 = vsel %vm228, %v101, 0
    %253 = vmatprep.subr.mxu0 0.0
    %254 = vmatpush1.msra.mxu0 0.0
    %255 = vmatprep.subr.mxu0 0.0
    %256 = vmatpush1.msra.mxu0 0.0
    %257 = vmatprep.subr.mxu0 0.0
    %258 = vmatpush1.msra.mxu0 0.0
    %259 = vmatprep.subr.mxu0 0.0
    %260 = vmatpush1.msra.mxu0 0.0
    %261 = vmatprep.subr.mxu0 0.0
    %262 = vmatpush1.msra.mxu0 0.0
    %263 = vmatprep.subr.mxu0 0.0
    %264 = vmatpush1.msra.mxu0 0.0
    %265 = vmatprep.subr.mxu0 0.0
    %266 = vmatpush1.msra.mxu0 0.0
    %267 = vmatprep.subr.mxu0 0.0
    %268 = vmatpush1.msra.mxu0 0.0
    %269 = vmatprep.subr.mxu0 0.0
    %270 = vmatpush1.msra.mxu0 0.0
    %271 = vmatprep.subr.mxu0 0.0
    %272 = vmatpush1.msra.mxu0 %v221
    %273 = vmatprep.subr.mxu0 0.0
    %274 = vmatpush1.msra.mxu0 %v216
    %275 = vmatprep.subr.mxu0 0.0
    %276 = vmatpush1.msra.mxu0 %v211
    %277 = vmatprep.subr.mxu0 0.0
    %278 = vmatpush1.msra.mxu0 %v206
    %279 = vmatprep.subr.mxu0 0.0
    %280 = vmatpush1.msra.mxu0 %v201
    %281 = vmatprep.subr.mxu0 0.0
    %282 = vmatpush1.msra.mxu0 %v196
    %283 = vmatprep.subr.mxu0 0.0
    %284 = vmatpush1.msra.mxu0 %v191
    %285 = vmatprep.subr.mxu0 0.0
    %286 = vmatpush2.msra.mxu0 0.0
    %287 = vmatprep.subr.mxu0 0.0
    %288 = vmatpush2.msra.mxu0 0.0
    %289 = vmatprep.subr.mxu0 0.0
    %290 = vmatpush2.msra.mxu0 0.0
    %291 = vmatprep.subr.mxu0 0.0
    %292 = vmatpush2.msra.mxu0 0.0
    %293 = vmatprep.subr.mxu0 0.0
    %294 = vmatpush2.msra.mxu0 0.0
    %295 = vmatprep.subr.mxu0 0.0
    %296 = vmatpush2.msra.mxu0 0.0
    %297 = vmatprep.subr.mxu0 0.0
    %298 = vmatpush2.msra.mxu0 0.0
    %299 = vmatprep.subr.mxu0 0.0
    %300 = vmatpush2.msra.mxu0 0.0
    %301 = vmatprep.subr.mxu0 0.0
    %302 = vmatpush2.msra.mxu0 0.0
    %303 = vmatprep.subr.mxu0 0.0
    %304 = vmatpush2.msra.mxu0 0.0
    %305 = vmatprep.subr.mxu0 0.0
    %306 = vmatpush2.msra.mxu0 0.0
    %307 = vmatprep.subr.mxu0 0.0
    %308 = vmatpush2.msra.mxu0 0.0
    %309 = vmatprep.subr.mxu0 0.0
    %310 = vmatpush2.msra.mxu0 0.0
    %311 = vmatprep.subr.mxu0 0.0
    %312 = vmatpush2.msra.mxu0 0.0
    %313 = vmatprep.subr.mxu0 0.0
    %314 = vmatpush2.msra.mxu0 0.0
    %315 = vmatprep.subr.mxu0 0.0
    %316 = vmatpush2.msra.mxu0 0.0
    %317 = vmatprep.mubr.f32.mxu0 0.0
    %318 = vmatmul.mubr.f32.gmra.mxu0 %v230
    %v319 = vpop.f32.mrf.mxu0
    %v320 = vadd.f32 %v227, %v319
    %v321 = vpop.f32.mrf.mxu0
    %322 = vmatprep.mubr.f32.mxu0 0.0
    %323 = vmatmul.mubr.f32.gmra.mxu0 %v233
    %v324 = vpop.f32.mrf.mxu0
    %v325 = vadd.f32 %v227, %v324
    %v326 = vpop.f32.mrf.mxu0
    %327 = vmatprep.mubr.f32.mxu0 0.0
    %328 = vmatmul.mubr.f32.gmra.mxu0 %v236
    %v329 = vpop.f32.mrf.mxu0
    %v330 = vadd.f32 %v227, %v329
    %v331 = vpop.f32.mrf.mxu0
    %332 = vmatprep.mubr.f32.mxu0 0.0
    %333 = vmatmul.mubr.f32.gmra.mxu0 %v239
    %v334 = vpop.f32.mrf.mxu0
    %v335 = vadd.f32 %v227, %v334
    %v336 = vpop.f32.mrf.mxu0
    %337 = vmatprep.mubr.f32.mxu0 0.0
    %338 = vmatmul.mubr.f32.gmra.mxu0 %v242
    %v339 = vpop.f32.mrf.mxu0
    %v340 = vadd.f32 %v227, %v339
    %v341 = vpop.f32.mrf.mxu0
    %342 = vmatprep.mubr.f32.mxu0 0.0
    %343 = vmatmul.mubr.f32.gmra.mxu0 %v245
    %v344 = vpop.f32.mrf.mxu0
    %v345 = vadd.f32 %v227, %v344
    %v346 = vpop.f32.mrf.mxu0
    %347 = vmatprep.mubr.f32.mxu0 0.0
    %348 = vmatmul.mubr.f32.gmra.mxu0 %v248
    %v349 = vpop.f32.mrf.mxu0
    %v350 = vadd.f32 %v227, %v349
    %v351 = vpop.f32.mrf.mxu0
    %352 = vmatprep.mubr.f32.mxu0 0.0
    %353 = vmatmul.mubr.f32.gmra.mxu0 %v251
    %v354 = vpop.f32.mrf.mxu0
    %v355 = vadd.f32 %v227, %v354
    %v356 = vpop.f32.mrf.mxu0
    %357 = vdwg.mxu0
    %v359 = vsel %vm102, 0.0, 0
    %361 = vmatprep.subr.mxu0 0.0
    %362 = vmatpush1.msra.mxu0 0.0
    %363 = vmatprep.subr.mxu0 0.0
    %364 = vmatpush1.msra.mxu0 0.0
    %365 = vmatprep.subr.mxu0 0.0
    %366 = vmatpush1.msra.mxu0 0.0
    %367 = vmatprep.subr.mxu0 0.0
    %368 = vmatpush1.msra.mxu0 0.0
    %369 = vmatprep.subr.mxu0 0.0
    %370 = vmatpush1.msra.mxu0 0.0
    %371 = vmatprep.subr.mxu0 0.0
    %372 = vmatpush1.msra.mxu0 0.0
    %373 = vmatprep.subr.mxu0 0.0
    %374 = vmatpush1.msra.mxu0 0.0
    %375 = vmatprep.subr.mxu0 0.0
    %376 = vmatpush1.msra.mxu0 0.0
    %377 = vmatprep.subr.mxu0 0.0
    %378 = vmatpush1.msra.mxu0 0.0
    %379 = vmatprep.subr.mxu0 0.0
    %380 = vmatpush1.msra.mxu0 0.0
    %381 = vmatprep.subr.mxu0 0.0
    %382 = vmatpush1.msra.mxu0 0.0
    %383 = vmatprep.subr.mxu0 0.0
    %384 = vmatpush1.msra.mxu0 0.0
    %385 = vmatprep.subr.mxu0 0.0
    %386 = vmatpush1.msra.mxu0 %v40
    %387 = vmatprep.subr.mxu0 0.0
    %388 = vmatpush1.msra.mxu0 %v39
    %389 = vmatprep.subr.mxu0 0.0
    %390 = vmatpush1.msra.mxu0 %v38
    %391 = vmatprep.subr.mxu0 0.0
    %392 = vmatpush1.msra.mxu0 %v37
    %393 = vmatprep.subr.mxu0 0.0
    %394 = vmatpush2.msra.mxu0 0.0
    %395 = vmatprep.subr.mxu0 0.0
    %396 = vmatpush2.msra.mxu0 0.0
    %397 = vmatprep.subr.mxu0 0.0
    %398 = vmatpush2.msra.mxu0 0.0
    %399 = vmatprep.subr.mxu0 0.0
    %400 = vmatpush2.msra.mxu0 0.0
    %401 = vmatprep.subr.mxu0 0.0
    %402 = vmatpush2.msra.mxu0 0.0
    %403 = vmatprep.subr.mxu0 0.0
    %404 = vmatpush2.msra.mxu0 0.0
    %405 = vmatprep.subr.mxu0 0.0
    %406 = vmatpush2.msra.mxu0 0.0
    %407 = vmatprep.subr.mxu0 0.0
    %408 = vmatpush2.msra.mxu0 0.0
    %409 = vmatprep.subr.mxu0 0.0
    %410 = vmatpush2.msra.mxu0 0.0
    %411 = vmatprep.subr.mxu0 0.0
    %412 = vmatpush2.msra.mxu0 0.0
    %413 = vmatprep.subr.mxu0 0.0
    %414 = vmatpush2.msra.mxu0 0.0
    %415 = vmatprep.subr.mxu0 0.0
    %416 = vmatpush2.msra.mxu0 0.0
    %417 = vmatprep.subr.mxu0 0.0
    %418 = vmatpush2.msra.mxu0 0.0
    %419 = vmatprep.subr.mxu0 0.0
    %420 = vmatpush2.msra.mxu0 0.0
    %421 = vmatprep.subr.mxu0 0.0
    %422 = vmatpush2.msra.mxu0 0.0
    %423 = vmatprep.subr.mxu0 0.0
    %424 = vmatpush2.msra.mxu0 0.0
    %425 = vmatprep.mubr.f32.mxu0 0.0
    %426 = vmatmul.mubr.f32.gmra.mxu0 %v359
    %v427 = vpop.f32.mrf.mxu0
    %v428 = vadd.f32 0.0, %v427
    %v429 = vpop.f32.mrf.mxu0
    %430 = vdwg.mxu0
    %v431 = vadd.f32 %v320, %v428
    %v432 = vxor.u32 %v431, 2147483648
    %v433 = vmul.f32 %v432, 1.442695
    %v434 = vpow.pop %v433
    %v435 = vadd.f32 %v434, 1.0
    %v436 = vrcp.pop %v435
    %v437 = vmul.f32 1.0, %v436
    %v438 = vtanh.pop %v431
    %v439 = vmul.f32 %v437, 0.0
    %441 = vrot.lane.b32.xlu0 %v438, 64
    %v442 = vpop.permute.xlu0 %441
    %v444 = vmul.f32 %v437, %v442
    %446 = vrot.lane.b32.xlu0 %v444, 32
    %v447 = vpop.permute.xlu0 %446
    %v449 = vadd.f32 %v439, %v447
    %v450 = vtanh.pop %v449
    %452 = vrot.lane.b32.xlu0 %v450, 64
    %v453 = vpop.permute.xlu0 %452
    %v455 = vmul.f32 %v437, %v453
    %457 = vrot.lane.b32.xlu0 %v455, 32
    %v458 = vpop.permute.xlu0 %457
    %v459 = vsel %vm102, %v458, 0
    %461 = vmatprep.subr.mxu0 0.0
    %462 = vmatpush1.msra.mxu0 0.0
    %463 = vmatprep.subr.mxu0 0.0
    %464 = vmatpush1.msra.mxu0 0.0
    %465 = vmatprep.subr.mxu0 0.0
    %466 = vmatpush1.msra.mxu0 0.0
    %467 = vmatprep.subr.mxu0 0.0
    %468 = vmatpush1.msra.mxu0 0.0
    %469 = vmatprep.subr.mxu0 0.0
    %470 = vmatpush1.msra.mxu0 0.0
    %471 = vmatprep.subr.mxu0 0.0
    %472 = vmatpush1.msra.mxu0 0.0
    %473 = vmatprep.subr.mxu0 0.0
    %474 = vmatpush1.msra.mxu0 0.0
    %475 = vmatprep.subr.mxu0 0.0
    %476 = vmatpush1.msra.mxu0 0.0
    %477 = vmatprep.subr.mxu0 0.0
    %478 = vmatpush1.msra.mxu0 0.0
    %479 = vmatprep.subr.mxu0 0.0
    %480 = vmatpush1.msra.mxu0 0.0
    %481 = vmatprep.subr.mxu0 0.0
    %482 = vmatpush1.msra.mxu0 0.0
    %483 = vmatprep.subr.mxu0 0.0
    %484 = vmatpush1.msra.mxu0 0.0
    %485 = vmatprep.subr.mxu0 0.0
    %486 = vmatpush1.msra.mxu0 %v40
    %487 = vmatprep.subr.mxu0 0.0
    %488 = vmatpush1.msra.mxu0 %v39
    %489 = vmatprep.subr.mxu0 0.0
    %490 = vmatpush1.msra.mxu0 %v38
    %491 = vmatprep.subr.mxu0 0.0
    %492 = vmatpush1.msra.mxu0 %v37
    %493 = vmatprep.subr.mxu0 0.0
    %494 = vmatpush2.msra.mxu0 0.0
    %495 = vmatprep.subr.mxu0 0.0
    %496 = vmatpush2.msra.mxu0 0.0
    %497 = vmatprep.subr.mxu0 0.0
    %498 = vmatpush2.msra.mxu0 0.0
    %499 = vmatprep.subr.mxu0 0.0
    %500 = vmatpush2.msra.mxu0 0.0
    %501 = vmatprep.subr.mxu0 0.0
    %502 = vmatpush2.msra.mxu0 0.0
    %503 = vmatprep.subr.mxu0 0.0
    %504 = vmatpush2.msra.mxu0 0.0
    %505 = vmatprep.subr.mxu0 0.0
    %506 = vmatpush2.msra.mxu0 0.0
    %507 = vmatprep.subr.mxu0 0.0
    %508 = vmatpush2.msra.mxu0 0.0
    %509 = vmatprep.subr.mxu0 0.0
    %510 = vmatpush2.msra.mxu0 0.0
    %511 = vmatprep.subr.mxu0 0.0
    %512 = vmatpush2.msra.mxu0 0.0
    %513 = vmatprep.subr.mxu0 0.0
    %514 = vmatpush2.msra.mxu0 0.0
    %515 = vmatprep.subr.mxu0 0.0
    %516 = vmatpush2.msra.mxu0 0.0
    %517 = vmatprep.subr.mxu0 0.0
    %518 = vmatpush2.msra.mxu0 0.0
    %519 = vmatprep.subr.mxu0 0.0
    %520 = vmatpush2.msra.mxu0 0.0
    %521 = vmatprep.subr.mxu0 0.0
    %522 = vmatpush2.msra.mxu0 0.0
    %523 = vmatprep.subr.mxu0 0.0
    %524 = vmatpush2.msra.mxu0 0.0
    %525 = vmatprep.mubr.f32.mxu0 0.0
    %526 = vmatmul.mubr.f32.gmra.mxu0 %v459
    %v527 = vpop.f32.mrf.mxu0
    %v528 = vadd.f32 0.0, %v527
    %v529 = vpop.f32.mrf.mxu0
    %530 = vdwg.mxu0
    %v531 = vadd.f32 %v325, %v528
    %v532 = vxor.u32 %v531, 2147483648
    %v533 = vmul.f32 %v532, 1.442695
    %v534 = vpow.pop %v533
    %v535 = vadd.f32 %v534, 1.0
    %v536 = vrcp.pop %v535
    %v537 = vmul.f32 1.0, %v536
    %v538 = vtanh.pop %v531
    %v539 = vmul.f32 %v537, %v449
    %541 = vrot.lane.b32.xlu0 %v538, 64
    %v542 = vpop.permute.xlu0 %541
    %v544 = vmul.f32 %v537, %v542
    %546 = vrot.lane.b32.xlu0 %v544, 32
    %v547 = vpop.permute.xlu0 %546
    %v549 = vadd.f32 %v539, %v547
    %v550 = vtanh.pop %v549
    %552 = vrot.lane.b32.xlu0 %v550, 64
    %v553 = vpop.permute.xlu0 %552
    %v555 = vmul.f32 %v537, %v553
    %557 = vrot.lane.b32.xlu0 %v555, 32
    %v558 = vpop.permute.xlu0 %557
    %v559 = vsel %vm102, %v558, 0
    %561 = vmatprep.subr.mxu0 0.0
    %562 = vmatpush1.msra.mxu0 0.0
    %563 = vmatprep.subr.mxu0 0.0
    %564 = vmatpush1.msra.mxu0 0.0
    %565 = vmatprep.subr.mxu0 0.0
    %566 = vmatpush1.msra.mxu0 0.0
    %567 = vmatprep.subr.mxu0 0.0
    %568 = vmatpush1.msra.mxu0 0.0
    %569 = vmatprep.subr.mxu0 0.0
    %570 = vmatpush1.msra.mxu0 0.0
    %571 = vmatprep.subr.mxu0 0.0
    %572 = vmatpush1.msra.mxu0 0.0
    %573 = vmatprep.subr.mxu0 0.0
    %574 = vmatpush1.msra.mxu0 0.0
    %575 = vmatprep.subr.mxu0 0.0
    %576 = vmatpush1.msra.mxu0 0.0
    %577 = vmatprep.subr.mxu0 0.0
    %578 = vmatpush1.msra.mxu0 0.0
    %579 = vmatprep.subr.mxu0 0.0
    %580 = vmatpush1.msra.mxu0 0.0
    %581 = vmatprep.subr.mxu0 0.0
    %582 = vmatpush1.msra.mxu0 0.0
    %583 = vmatprep.subr.mxu0 0.0
    %584 = vmatpush1.msra.mxu0 0.0
    %585 = vmatprep.subr.mxu0 0.0
    %586 = vmatpush1.msra.mxu0 %v40
    %587 = vmatprep.subr.mxu0 0.0
    %588 = vmatpush1.msra.mxu0 %v39
    %589 = vmatprep.subr.mxu0 0.0
    %590 = vmatpush1.msra.mxu0 %v38
    %591 = vmatprep.subr.mxu0 0.0
    %592 = vmatpush1.msra.mxu0 %v37
    %593 = vmatprep.subr.mxu0 0.0
    %594 = vmatpush2.msra.mxu0 0.0
    %595 = vmatprep.subr.mxu0 0.0
    %596 = vmatpush2.msra.mxu0 0.0
    %597 = vmatprep.subr.mxu0 0.0
    %598 = vmatpush2.msra.mxu0 0.0
    %599 = vmatprep.subr.mxu0 0.0
    %600 = vmatpush2.msra.mxu0 0.0
    %601 = vmatprep.subr.mxu0 0.0
    %602 = vmatpush2.msra.mxu0 0.0
    %603 = vmatprep.subr.mxu0 0.0
    %604 = vmatpush2.msra.mxu0 0.0
    %605 = vmatprep.subr.mxu0 0.0
    %606 = vmatpush2.msra.mxu0 0.0
    %607 = vmatprep.subr.mxu0 0.0
    %608 = vmatpush2.msra.mxu0 0.0
    %609 = vmatprep.subr.mxu0 0.0
    %610 = vmatpush2.msra.mxu0 0.0
    %611 = vmatprep.subr.mxu0 0.0
    %612 = vmatpush2.msra.mxu0 0.0
    %613 = vmatprep.subr.mxu0 0.0
    %614 = vmatpush2.msra.mxu0 0.0
    %615 = vmatprep.subr.mxu0 0.0
    %616 = vmatpush2.msra.mxu0 0.0
    %617 = vmatprep.subr.mxu0 0.0
    %618 = vmatpush2.msra.mxu0 0.0
    %619 = vmatprep.subr.mxu0 0.0
    %620 = vmatpush2.msra.mxu0 0.0
    %621 = vmatprep.subr.mxu0 0.0
    %622 = vmatpush2.msra.mxu0 0.0
    %623 = vmatprep.subr.mxu0 0.0
    %624 = vmatpush2.msra.mxu0 0.0
    %625 = vmatprep.mubr.f32.mxu0 0.0
    %626 = vmatmul.mubr.f32.gmra.mxu0 %v559
    %v627 = vpop.f32.mrf.mxu0
    %v628 = vadd.f32 0.0, %v627
    %v629 = vpop.f32.mrf.mxu0
    %630 = vdwg.mxu0
    %v631 = vadd.f32 %v330, %v628
    %v632 = vxor.u32 %v631, 2147483648
    %v633 = vmul.f32 %v632, 1.442695
    %v634 = vpow.pop %v633
    %v635 = vadd.f32 %v634, 1.0
    %v636 = vrcp.pop %v635
    %v637 = vmul.f32 1.0, %v636
    %v638 = vtanh.pop %v631
    %v639 = vmul.f32 %v637, %v549
    %641 = vrot.lane.b32.xlu0 %v638, 64
    %v642 = vpop.permute.xlu0 %641
    %v644 = vmul.f32 %v637, %v642
    %646 = vrot.lane.b32.xlu0 %v644, 32
    %v647 = vpop.permute.xlu0 %646
    %v649 = vadd.f32 %v639, %v647
    %v650 = vtanh.pop %v649
    %652 = vrot.lane.b32.xlu0 %v650, 64
    %v653 = vpop.permute.xlu0 %652
    %v655 = vmul.f32 %v637, %v653
    %657 = vrot.lane.b32.xlu0 %v655, 32
    %v658 = vpop.permute.xlu0 %657
    %v659 = vsel %vm102, %v658, 0
    %661 = vmatprep.subr.mxu0 0.0
    %662 = vmatpush1.msra.mxu0 0.0
    %663 = vmatprep.subr.mxu0 0.0
    %664 = vmatpush1.msra.mxu0 0.0
    %665 = vmatprep.subr.mxu0 0.0
    %666 = vmatpush1.msra.mxu0 0.0
    %667 = vmatprep.subr.mxu0 0.0
    %668 = vmatpush1.msra.mxu0 0.0
    %669 = vmatprep.subr.mxu0 0.0
    %670 = vmatpush1.msra.mxu0 0.0
    %671 = vmatprep.subr.mxu0 0.0
    %672 = vmatpush1.msra.mxu0 0.0
    %673 = vmatprep.subr.mxu0 0.0
    %674 = vmatpush1.msra.mxu0 0.0
    %675 = vmatprep.subr.mxu0 0.0
    %676 = vmatpush1.msra.mxu0 0.0
    %677 = vmatprep.subr.mxu0 0.0
    %678 = vmatpush1.msra.mxu0 0.0
    %679 = vmatprep.subr.mxu0 0.0
    %680 = vmatpush1.msra.mxu0 0.0
    %681 = vmatprep.subr.mxu0 0.0
    %682 = vmatpush1.msra.mxu0 0.0
    %683 = vmatprep.subr.mxu0 0.0
    %684 = vmatpush1.msra.mxu0 0.0
    %685 = vmatprep.subr.mxu0 0.0
    %686 = vmatpush1.msra.mxu0 %v40
    %687 = vmatprep.subr.mxu0 0.0
    %688 = vmatpush1.msra.mxu0 %v39
    %689 = vmatprep.subr.mxu0 0.0
    %690 = vmatpush1.msra.mxu0 %v38
    %691 = vmatprep.subr.mxu0 0.0
    %692 = vmatpush1.msra.mxu0 %v37
    %693 = vmatprep.subr.mxu0 0.0
    %694 = vmatpush2.msra.mxu0 0.0
    %695 = vmatprep.subr.mxu0 0.0
    %696 = vmatpush2.msra.mxu0 0.0
    %697 = vmatprep.subr.mxu0 0.0
    %698 = vmatpush2.msra.mxu0 0.0
    %699 = vmatprep.subr.mxu0 0.0
    %700 = vmatpush2.msra.mxu0 0.0
    %701 = vmatprep.subr.mxu0 0.0
    %702 = vmatpush2.msra.mxu0 0.0
    %703 = vmatprep.subr.mxu0 0.0
    %704 = vmatpush2.msra.mxu0 0.0
    %705 = vmatprep.subr.mxu0 0.0
    %706 = vmatpush2.msra.mxu0 0.0
    %707 = vmatprep.subr.mxu0 0.0
    %708 = vmatpush2.msra.mxu0 0.0
    %709 = vmatprep.subr.mxu0 0.0
    %710 = vmatpush2.msra.mxu0 0.0
    %711 = vmatprep.subr.mxu0 0.0
    %712 = vmatpush2.msra.mxu0 0.0
    %713 = vmatprep.subr.mxu0 0.0
    %714 = vmatpush2.msra.mxu0 0.0
    %715 = vmatprep.subr.mxu0 0.0
    %716 = vmatpush2.msra.mxu0 0.0
    %717 = vmatprep.subr.mxu0 0.0
    %718 = vmatpush2.msra.mxu0 0.0
    %719 = vmatprep.subr.mxu0 0.0
    %720 = vmatpush2.msra.mxu0 0.0
    %721 = vmatprep.subr.mxu0 0.0
    %722 = vmatpush2.msra.mxu0 0.0
    %723 = vmatprep.subr.mxu0 0.0
    %724 = vmatpush2.msra.mxu0 0.0
    %725 = vmatprep.mubr.f32.mxu0 0.0
    %726 = vmatmul.mubr.f32.gmra.mxu0 %v659
    %v727 = vpop.f32.mrf.mxu0
    %v728 = vadd.f32 0.0, %v727
    %v729 = vpop.f32.mrf.mxu0
    %730 = vdwg.mxu0
    %v731 = vadd.f32 %v335, %v728
    %v732 = vxor.u32 %v731, 2147483648
    %v733 = vmul.f32 %v732, 1.442695
    %v734 = vpow.pop %v733
    %v735 = vadd.f32 %v734, 1.0
    %v736 = vrcp.pop %v735
    %v737 = vmul.f32 1.0, %v736
    %v738 = vtanh.pop %v731
    %v739 = vmul.f32 %v737, %v649
    %741 = vrot.lane.b32.xlu0 %v738, 64
    %v742 = vpop.permute.xlu0 %741
    %v744 = vmul.f32 %v737, %v742
    %746 = vrot.lane.b32.xlu0 %v744, 32
    %v747 = vpop.permute.xlu0 %746
    %v749 = vadd.f32 %v739, %v747
    %v750 = vtanh.pop %v749
    %752 = vrot.lane.b32.xlu0 %v750, 64
    %v753 = vpop.permute.xlu0 %752
    %v755 = vmul.f32 %v737, %v753
    %757 = vrot.lane.b32.xlu0 %v755, 32
    %v758 = vpop.permute.xlu0 %757
    %v759 = vsel %vm102, %v758, 0
    %761 = vmatprep.subr.mxu0 0.0
    %762 = vmatpush1.msra.mxu0 0.0
    %763 = vmatprep.subr.mxu0 0.0
    %764 = vmatpush1.msra.mxu0 0.0
    %765 = vmatprep.subr.mxu0 0.0
    %766 = vmatpush1.msra.mxu0 0.0
    %767 = vmatprep.subr.mxu0 0.0
    %768 = vmatpush1.msra.mxu0 0.0
    %769 = vmatprep.subr.mxu0 0.0
    %770 = vmatpush1.msra.mxu0 0.0
    %771 = vmatprep.subr.mxu0 0.0
    %772 = vmatpush1.msra.mxu0 0.0
    %773 = vmatprep.subr.mxu0 0.0
    %774 = vmatpush1.msra.mxu0 0.0
    %775 = vmatprep.subr.mxu0 0.0
    %776 = vmatpush1.msra.mxu0 0.0
    %777 = vmatprep.subr.mxu0 0.0
    %778 = vmatpush1.msra.mxu0 0.0
    %779 = vmatprep.subr.mxu0 0.0
    %780 = vmatpush1.msra.mxu0 0.0
    %781 = vmatprep.subr.mxu0 0.0
    %782 = vmatpush1.msra.mxu0 0.0
    %783 = vmatprep.subr.mxu0 0.0
    %784 = vmatpush1.msra.mxu0 0.0
    %785 = vmatprep.subr.mxu0 0.0
    %786 = vmatpush1.msra.mxu0 %v40
    %787 = vmatprep.subr.mxu0 0.0
    %788 = vmatpush1.msra.mxu0 %v39
    %789 = vmatprep.subr.mxu0 0.0
    %790 = vmatpush1.msra.mxu0 %v38
    %791 = vmatprep.subr.mxu0 0.0
    %792 = vmatpush1.msra.mxu0 %v37
    %793 = vmatprep.subr.mxu0 0.0
    %794 = vmatpush2.msra.mxu0 0.0
    %795 = vmatprep.subr.mxu0 0.0
    %796 = vmatpush2.msra.mxu0 0.0
    %797 = vmatprep.subr.mxu0 0.0
    %798 = vmatpush2.msra.mxu0 0.0
    %799 = vmatprep.subr.mxu0 0.0
    %800 = vmatpush2.msra.mxu0 0.0
    %801 = vmatprep.subr.mxu0 0.0
    %802 = vmatpush2.msra.mxu0 0.0
    %803 = vmatprep.subr.mxu0 0.0
    %804 = vmatpush2.msra.mxu0 0.0
    %805 = vmatprep.subr.mxu0 0.0
    %806 = vmatpush2.msra.mxu0 0.0
    %807 = vmatprep.subr.mxu0 0.0
    %808 = vmatpush2.msra.mxu0 0.0
    %809 = vmatprep.subr.mxu0 0.0
    %810 = vmatpush2.msra.mxu0 0.0
    %811 = vmatprep.subr.mxu0 0.0
    %812 = vmatpush2.msra.mxu0 0.0
    %813 = vmatprep.subr.mxu0 0.0
    %814 = vmatpush2.msra.mxu0 0.0
    %815 = vmatprep.subr.mxu0 0.0
    %816 = vmatpush2.msra.mxu0 0.0
    %817 = vmatprep.subr.mxu0 0.0
    %818 = vmatpush2.msra.mxu0 0.0
    %819 = vmatprep.subr.mxu0 0.0
    %820 = vmatpush2.msra.mxu0 0.0
    %821 = vmatprep.subr.mxu0 0.0
    %822 = vmatpush2.msra.mxu0 0.0
    %823 = vmatprep.subr.mxu0 0.0
    %824 = vmatpush2.msra.mxu0 0.0
    %825 = vmatprep.mubr.f32.mxu0 0.0
    %826 = vmatmul.mubr.f32.gmra.mxu0 %v759
    %v827 = vpop.f32.mrf.mxu0
    %v828 = vadd.f32 0.0, %v827
    %v829 = vpop.f32.mrf.mxu0
    %830 = vdwg.mxu0
    %v831 = vadd.f32 %v340, %v828
    %v832 = vxor.u32 %v831, 2147483648
    %v833 = vmul.f32 %v832, 1.442695
    %v834 = vpow.pop %v833
    %v835 = vadd.f32 %v834, 1.0
    %v836 = vrcp.pop %v835
    %v837 = vmul.f32 1.0, %v836
    %v838 = vtanh.pop %v831
    %v839 = vmul.f32 %v837, %v749
    %841 = vrot.lane.b32.xlu0 %v838, 64
    %v842 = vpop.permute.xlu0 %841
    %v844 = vmul.f32 %v837, %v842
    %846 = vrot.lane.b32.xlu0 %v844, 32
    %v847 = vpop.permute.xlu0 %846
    %v849 = vadd.f32 %v839, %v847
    %v850 = vtanh.pop %v849
    %852 = vrot.lane.b32.xlu0 %v850, 64
    %v853 = vpop.permute.xlu0 %852
    %v855 = vmul.f32 %v837, %v853
    %857 = vrot.lane.b32.xlu0 %v855, 32
    %v858 = vpop.permute.xlu0 %857
    %v859 = vsel %vm102, %v858, 0
    %861 = vmatprep.subr.mxu0 0.0
    %862 = vmatpush1.msra.mxu0 0.0
    %863 = vmatprep.subr.mxu0 0.0
    %864 = vmatpush1.msra.mxu0 0.0
    %865 = vmatprep.subr.mxu0 0.0
    %866 = vmatpush1.msra.mxu0 0.0
    %867 = vmatprep.subr.mxu0 0.0
    %868 = vmatpush1.msra.mxu0 0.0
    %869 = vmatprep.subr.mxu0 0.0
    %870 = vmatpush1.msra.mxu0 0.0
    %871 = vmatprep.subr.mxu0 0.0
    %872 = vmatpush1.msra.mxu0 0.0
    %873 = vmatprep.subr.mxu0 0.0
    %874 = vmatpush1.msra.mxu0 0.0
    %875 = vmatprep.subr.mxu0 0.0
    %876 = vmatpush1.msra.mxu0 0.0
    %877 = vmatprep.subr.mxu0 0.0
    %878 = vmatpush1.msra.mxu0 0.0
    %879 = vmatprep.subr.mxu0 0.0
    %880 = vmatpush1.msra.mxu0 0.0
    %881 = vmatprep.subr.mxu0 0.0
    %882 = vmatpush1.msra.mxu0 0.0
    %883 = vmatprep.subr.mxu0 0.0
    %884 = vmatpush1.msra.mxu0 0.0
    %885 = vmatprep.subr.mxu0 0.0
    %886 = vmatpush1.msra.mxu0 %v40
    %887 = vmatprep.subr.mxu0 0.0
    %888 = vmatpush1.msra.mxu0 %v39
    %889 = vmatprep.subr.mxu0 0.0
    %890 = vmatpush1.msra.mxu0 %v38
    %891 = vmatprep.subr.mxu0 0.0
    %892 = vmatpush1.msra.mxu0 %v37
    %893 = vmatprep.subr.mxu0 0.0
    %894 = vmatpush2.msra.mxu0 0.0
    %895 = vmatprep.subr.mxu0 0.0
    %896 = vmatpush2.msra.mxu0 0.0
    %897 = vmatprep.subr.mxu0 0.0
    %898 = vmatpush2.msra.mxu0 0.0
    %899 = vmatprep.subr.mxu0 0.0
    %900 = vmatpush2.msra.mxu0 0.0
    %901 = vmatprep.subr.mxu0 0.0
    %902 = vmatpush2.msra.mxu0 0.0
    %903 = vmatprep.subr.mxu0 0.0
    %904 = vmatpush2.msra.mxu0 0.0
    %905 = vmatprep.subr.mxu0 0.0
    %906 = vmatpush2.msra.mxu0 0.0
    %907 = vmatprep.subr.mxu0 0.0
    %908 = vmatpush2.msra.mxu0 0.0
    %909 = vmatprep.subr.mxu0 0.0
    %910 = vmatpush2.msra.mxu0 0.0
    %911 = vmatprep.subr.mxu0 0.0
    %912 = vmatpush2.msra.mxu0 0.0
    %913 = vmatprep.subr.mxu0 0.0
    %914 = vmatpush2.msra.mxu0 0.0
    %915 = vmatprep.subr.mxu0 0.0
    %916 = vmatpush2.msra.mxu0 0.0
    %917 = vmatprep.subr.mxu0 0.0
    %918 = vmatpush2.msra.mxu0 0.0
    %919 = vmatprep.subr.mxu0 0.0
    %920 = vmatpush2.msra.mxu0 0.0
    %921 = vmatprep.subr.mxu0 0.0
    %922 = vmatpush2.msra.mxu0 0.0
    %923 = vmatprep.subr.mxu0 0.0
    %924 = vmatpush2.msra.mxu0 0.0
    %925 = vmatprep.mubr.f32.mxu0 0.0
    %926 = vmatmul.mubr.f32.gmra.mxu0 %v859
    %v927 = vpop.f32.mrf.mxu0
    %v928 = vadd.f32 0.0, %v927
    %v929 = vpop.f32.mrf.mxu0
    %930 = vdwg.mxu0
    %v931 = vadd.f32 %v345, %v928
    %v932 = vxor.u32 %v931, 2147483648
    %v933 = vmul.f32 %v932, 1.442695
    %v934 = vpow.pop %v933
    %v935 = vadd.f32 %v934, 1.0
    %v936 = vrcp.pop %v935
    %v937 = vmul.f32 1.0, %v936
    %v938 = vtanh.pop %v931
    %v939 = vmul.f32 %v937, %v849
    %941 = vrot.lane.b32.xlu0 %v938, 64
    %v942 = vpop.permute.xlu0 %941
    %v944 = vmul.f32 %v937, %v942
    %946 = vrot.lane.b32.xlu0 %v944, 32
    %v947 = vpop.permute.xlu0 %946
    %v949 = vadd.f32 %v939, %v947
    %v950 = vtanh.pop %v949
    %952 = vrot.lane.b32.xlu0 %v950, 64
    %v953 = vpop.permute.xlu0 %952
    %v955 = vmul.f32 %v937, %v953
    %957 = vrot.lane.b32.xlu0 %v955, 32
    %v958 = vpop.permute.xlu0 %957
    %v959 = vsel %vm102, %v958, 0
    %961 = vmatprep.subr.mxu0 0.0
    %962 = vmatpush1.msra.mxu0 0.0
    %963 = vmatprep.subr.mxu0 0.0
    %964 = vmatpush1.msra.mxu0 0.0
    %965 = vmatprep.subr.mxu0 0.0
    %966 = vmatpush1.msra.mxu0 0.0
    %967 = vmatprep.subr.mxu0 0.0
    %968 = vmatpush1.msra.mxu0 0.0
    %969 = vmatprep.subr.mxu0 0.0
    %970 = vmatpush1.msra.mxu0 0.0
    %971 = vmatprep.subr.mxu0 0.0
    %972 = vmatpush1.msra.mxu0 0.0
    %973 = vmatprep.subr.mxu0 0.0
    %974 = vmatpush1.msra.mxu0 0.0
    %975 = vmatprep.subr.mxu0 0.0
    %976 = vmatpush1.msra.mxu0 0.0
    %977 = vmatprep.subr.mxu0 0.0
    %978 = vmatpush1.msra.mxu0 0.0
    %979 = vmatprep.subr.mxu0 0.0
    %980 = vmatpush1.msra.mxu0 0.0
    %981 = vmatprep.subr.mxu0 0.0
    %982 = vmatpush1.msra.mxu0 0.0
    %983 = vmatprep.subr.mxu0 0.0
    %984 = vmatpush1.msra.mxu0 0.0
    %985 = vmatprep.subr.mxu0 0.0
    %986 = vmatpush1.msra.mxu0 %v40
    %987 = vmatprep.subr.mxu0 0.0
    %988 = vmatpush1.msra.mxu0 %v39
    %989 = vmatprep.subr.mxu0 0.0
    %990 = vmatpush1.msra.mxu0 %v38
    %991 = vmatprep.subr.mxu0 0.0
    %992 = vmatpush1.msra.mxu0 %v37
    %993 = vmatprep.subr.mxu0 0.0
    %994 = vmatpush2.msra.mxu0 0.0
    %995 = vmatprep.subr.mxu0 0.0
    %996 = vmatpush2.msra.mxu0 0.0
    %997 = vmatprep.subr.mxu0 0.0
    %998 = vmatpush2.msra.mxu0 0.0
    %999 = vmatprep.subr.mxu0 0.0
    %1000 = vmatpush2.msra.mxu0 0.0
    %1001 = vmatprep.subr.mxu0 0.0
    %1002 = vmatpush2.msra.mxu0 0.0
    %1003 = vmatprep.subr.mxu0 0.0
    %1004 = vmatpush2.msra.mxu0 0.0
    %1005 = vmatprep.subr.mxu0 0.0
    %1006 = vmatpush2.msra.mxu0 0.0
    %1007 = vmatprep.subr.mxu0 0.0
    %1008 = vmatpush2.msra.mxu0 0.0
    %1009 = vmatprep.subr.mxu0 0.0
    %1010 = vmatpush2.msra.mxu0 0.0
    %1011 = vmatprep.subr.mxu0 0.0
    %1012 = vmatpush2.msra.mxu0 0.0
    %1013 = vmatprep.subr.mxu0 0.0
    %1014 = vmatpush2.msra.mxu0 0.0
    %1015 = vmatprep.subr.mxu0 0.0
    %1016 = vmatpush2.msra.mxu0 0.0
    %1017 = vmatprep.subr.mxu0 0.0
    %1018 = vmatpush2.msra.mxu0 0.0
    %1019 = vmatprep.subr.mxu0 0.0
    %1020 = vmatpush2.msra.mxu0 0.0
    %1021 = vmatprep.subr.mxu0 0.0
    %1022 = vmatpush2.msra.mxu0 0.0
    %1023 = vmatprep.subr.mxu0 0.0
    %1024 = vmatpush2.msra.mxu0 0.0
    %1025 = vmatprep.mubr.f32.mxu0 0.0
    %1026 = vmatmul.mubr.f32.gmra.mxu0 %v959
    %v1027 = vpop.f32.mrf.mxu0
    %v1028 = vadd.f32 0.0, %v1027
    %v1029 = vpop.f32.mrf.mxu0
    %1030 = vdwg.mxu0
    %v1031 = vadd.f32 %v350, %v1028
    %v1032 = vxor.u32 %v1031, 2147483648
    %v1033 = vmul.f32 %v1032, 1.442695
    %v1034 = vpow.pop %v1033
    %v1035 = vadd.f32 %v1034, 1.0
    %v1036 = vrcp.pop %v1035
    %v1037 = vmul.f32 1.0, %v1036
    %v1038 = vtanh.pop %v1031
    %v1039 = vmul.f32 %v1037, %v949
    %1041 = vrot.lane.b32.xlu0 %v1038, 64
    %v1042 = vpop.permute.xlu0 %1041
    %v1044 = vmul.f32 %v1037, %v1042
    %1046 = vrot.lane.b32.xlu0 %v1044, 32
    %v1047 = vpop.permute.xlu0 %1046
    %v1049 = vadd.f32 %v1039, %v1047
    %v1050 = vtanh.pop %v1049
    %1052 = vrot.lane.b32.xlu0 %v1050, 64
    %v1053 = vpop.permute.xlu0 %1052
    %v1055 = vmul.f32 %v1037, %v1053
    %1057 = vrot.lane.b32.xlu0 %v1055, 32
    %v1058 = vpop.permute.xlu0 %1057
    %v1059 = vsel %vm102, %v1058, 0
    %1061 = vmatprep.subr.mxu0 0.0
    %1062 = vmatpush1.msra.mxu0 0.0
    %1063 = vmatprep.subr.mxu0 0.0
    %1064 = vmatpush1.msra.mxu0 0.0
    %1065 = vmatprep.subr.mxu0 0.0
    %1066 = vmatpush1.msra.mxu0 0.0
    %1067 = vmatprep.subr.mxu0 0.0
    %1068 = vmatpush1.msra.mxu0 0.0
    %1069 = vmatprep.subr.mxu0 0.0
    %1070 = vmatpush1.msra.mxu0 0.0
    %1071 = vmatprep.subr.mxu0 0.0
    %1072 = vmatpush1.msra.mxu0 0.0
    %1073 = vmatprep.subr.mxu0 0.0
    %1074 = vmatpush1.msra.mxu0 0.0
    %1075 = vmatprep.subr.mxu0 0.0
    %1076 = vmatpush1.msra.mxu0 0.0
    %1077 = vmatprep.subr.mxu0 0.0
    %1078 = vmatpush1.msra.mxu0 0.0
    %1079 = vmatprep.subr.mxu0 0.0
    %1080 = vmatpush1.msra.mxu0 0.0
    %1081 = vmatprep.subr.mxu0 0.0
    %1082 = vmatpush1.msra.mxu0 0.0
    %1083 = vmatprep.subr.mxu0 0.0
    %1084 = vmatpush1.msra.mxu0 0.0
    %1085 = vmatprep.subr.mxu0 0.0
    %1086 = vmatpush1.msra.mxu0 %v40
    %1087 = vmatprep.subr.mxu0 0.0
    %1088 = vmatpush1.msra.mxu0 %v39
    %1089 = vmatprep.subr.mxu0 0.0
    %1090 = vmatpush1.msra.mxu0 %v38
    %1091 = vmatprep.subr.mxu0 0.0
    %1092 = vmatpush1.msra.mxu0 %v37
    %1093 = vmatprep.subr.mxu0 0.0
    %1094 = vmatpush2.msra.mxu0 0.0
    %1095 = vmatprep.subr.mxu0 0.0
    %1096 = vmatpush2.msra.mxu0 0.0
    %1097 = vmatprep.subr.mxu0 0.0
    %1098 = vmatpush2.msra.mxu0 0.0
    %1099 = vmatprep.subr.mxu0 0.0
    %1100 = vmatpush2.msra.mxu0 0.0
    %1101 = vmatprep.subr.mxu0 0.0
    %1102 = vmatpush2.msra.mxu0 0.0
    %1103 = vmatprep.subr.mxu0 0.0
    %1104 = vmatpush2.msra.mxu0 0.0
    %1105 = vmatprep.subr.mxu0 0.0
    %1106 = vmatpush2.msra.mxu0 0.0
    %1107 = vmatprep.subr.mxu0 0.0
    %1108 = vmatpush2.msra.mxu0 0.0
    %1109 = vmatprep.subr.mxu0 0.0
    %1110 = vmatpush2.msra.mxu0 0.0
    %1111 = vmatprep.subr.mxu0 0.0
    %1112 = vmatpush2.msra.mxu0 0.0
    %1113 = vmatprep.subr.mxu0 0.0
    %1114 = vmatpush2.msra.mxu0 0.0
    %1115 = vmatprep.subr.mxu0 0.0
    %1116 = vmatpush2.msra.mxu0 0.0
    %1117 = vmatprep.subr.mxu0 0.0
    %1118 = vmatpush2.msra.mxu0 0.0
    %1119 = vmatprep.subr.mxu0 0.0
    %1120 = vmatpush2.msra.mxu0 0.0
    %1121 = vmatprep.subr.mxu0 0.0
    %1122 = vmatpush2.msra.mxu0 0.0
    %1123 = vmatprep.subr.mxu0 0.0
    %1124 = vmatpush2.msra.mxu0 0.0
    %1125 = vmatprep.mubr.f32.mxu0 0.0
    %1126 = vmatmul.mubr.f32.gmra.mxu0 %v1059
    %v1127 = vpop.f32.mrf.mxu0
    %v1128 = vadd.f32 0.0, %v1127
    %v1129 = vpop.f32.mrf.mxu0
    %1130 = vdwg.mxu0
    %v1131 = vadd.f32 %v355, %v1128
    %v1132 = vxor.u32 %v1131, 2147483648
    %v1133 = vmul.f32 %v1132, 1.442695
    %v1134 = vpow.pop %v1133
    %v1135 = vadd.f32 %v1134, 1.0
    %v1136 = vrcp.pop %v1135
    %v1137 = vmul.f32 1.0, %v1136
    %v1138 = vtanh.pop %v1131
    %v1139 = vmul.f32 %v1137, %v1049
    %1141 = vrot.lane.b32.xlu0 %v1138, 64
    %v1142 = vpop.permute.xlu0 %1141
    %v1144 = vmul.f32 %v1137, %v1142
    %1146 = vrot.lane.b32.xlu0 %v1144, 32
    %v1147 = vpop.permute.xlu0 %1146
    %v1149 = vadd.f32 %v1139, %v1147
    %v1150 = vtanh.pop %v1149
    %1152 = vrot.lane.b32.xlu0 %v1150, 64
    %v1153 = vpop.permute.xlu0 %1152
    %v1155 = vmul.f32 %v1137, %v1153
    %v1156 = vlaneseq
    %v1157 = vshrl.u32 %v1156, 7
    %v1158 = vsub.s32 0, %v1157
    %v1159 = vrot.slane %v42, %v1158
    %1161 = vrot.lane.b32.xlu0 %v1159, 96
    %v1162 = vpop.permute.xlu0 %1161
    %v1164 = vmul.f32 %v1155, %v1162
    %1166 = vrot.lane.b32.xlu0 %v1164, 32
    %v1167 = vpop.permute.xlu0 %1166
    %v1169 = vsel %vm102, %v1167, 0.0
    %1170 = vadd.xlane.f32.xlu0 %v1169
    %v1171 = vpop.xlane.xlu0 %1170
    %v1172 = vlaneseq
    %v1173 = vshrl.u32 %v1172, 7
    %v1174 = vsub.s32 0, %v1173
    %v1175 = vrot.slane %v43, %v1174
    %v1176 = vadd.f32 %v1171, %v1175
    %v1177 = vxor.u32 %v1176, 2147483648
    %v1178 = vmul.f32 %v1177, 1.442695
    %v1179 = vpow.pop %v1178
    %v1180 = vadd.f32 %v1179, 1.0
    %v1181 = vrcp.pop %v1180
    %v1182 = vmul.f32 1.0, %v1181
    %1183 = vst [vmem:[#allocation5] sm:$0xff] %v1182
    // Predicated region
    $region14: #{tpu_custom_call.1} parent=1 // pred_check
      _
    $region15: #{tpu_custom_call.1} parent=1 // pred_check_branch
      %1185 = sbr.rel (0) target = $region17
    $region16: #{tpu_custom_call.1} parent=1 // pred_region
      %s1187 = ssub.s32 128, 128
      %1188 = vsyncadd [#allocation4], %s1187
      %s1190 = sshll.u32 [#allocation5], 4
      %s1191 = int_to_ptr.vmem [resolvable:$true] %s1190
      %1193 = dma.vmem_to_hbm [thread:$0]  %s1191, 128, %s2, [#allocation4]
    $region17: #{tpu_custom_call.1} parent=1 // pred_fallthru
      _
    // Predicated region
    $region18: #{tpu_custom_call.1} parent=1 // pred_check
      _
    $region19: #{tpu_custom_call.1} parent=1 // pred_check_branch
      %1195 = sbr.rel (0) target = $region21
    $region20: #{tpu_custom_call.1} parent=1 // pred_region
      %1196 = dma.done [#allocation4], 128
    $region21: #{tpu_custom_call.1} parent=1 // pred_fallthru
      _
    %1197 = vsyncpa [#allocation3], 1
    %1198 = vsyncpa [#allocation4], 1

</llo_original>
